<compile_context>
chip_gen: v7x
topology: tpu7x:2x2x1
jax: 0.10.0
libtpu: 0.0.40
codegen_flags: <defaults>
</compile_context>

<pallas_src>
import functools

import jax
import jax.numpy as jnp
from jax.experimental import pallas as pl
from jax.experimental.pallas import tpu as pltpu

LANE = 128


def _round_up(n, m):
    return ((n + m - 1) // m) * m


def qnet_kernel(x_ref,
                w1_ref, b1_ref,
                w2_ref, b2_ref,
                w3_ref, b3_ref,
                w4_ref, b4_ref,
                out_ref, *, action_size):
    # x arrives f32 (no extra wrapper cast pass over HBM); cast on the VPU here.
    x = x_ref[...].astype(jnp.bfloat16)

    # K=8 first matmul is deliberately left unpadded: the kernel is
    # store/overhead-bound, not MXU-bound, so padding K would be pure waste.
    h = jnp.dot(x, w1_ref[...], preferred_element_type=jnp.float32) + b1_ref[...]
    h = jnp.maximum(h, 0.0)

    h = jnp.dot(h.astype(jnp.bfloat16), w2_ref[...],
                preferred_element_type=jnp.float32) + b2_ref[...]
    h = jnp.maximum(h, 0.0)

    h = jnp.dot(h.astype(jnp.bfloat16), w3_ref[...],
                preferred_element_type=jnp.float32) + b3_ref[...]
    h = jnp.maximum(h, 0.0)

    h = jnp.dot(h.astype(jnp.bfloat16), w4_ref[...],
                preferred_element_type=jnp.float32) + b4_ref[...]

    # Only the real action columns are written back (narrow masked store);
    # the 124 zero-padded lanes never touch HBM.
    out_ref[...] = h[:, :action_size].astype(out_ref.dtype)


def prepare_qnet_params(params):
    """One-time prep: pad sub-128 lane dims to 128 and cast weights to bf16."""
    def pad2(a, rows, cols):
        r, c = a.shape
        return jnp.pad(a, ((0, rows - r), (0, cols - c)))

    action_size = params["w4"].shape[1]
    h3_pad = _round_up(params["w3"].shape[1], LANE)        # 64  -> 128
    act_pad = _round_up(action_size, LANE)                 # 4   -> 128

    return {
        "w1": params["w1"].astype(jnp.bfloat16),                         # [S, 256]
        "b1": params["b1"].astype(jnp.float32),                          # [1, 256]
        "w2": params["w2"].astype(jnp.bfloat16),                         # [256, 128]
        "b2": params["b2"].astype(jnp.float32),                          # [1, 128]
        "w3": pad2(params["w3"], params["w3"].shape[0], h3_pad
                   ).astype(jnp.bfloat16),                               # [128, 128]
        "b3": pad2(params["b3"], 1, h3_pad).astype(jnp.float32),         # [1, 128]
        "w4": pad2(params["w4"], h3_pad, act_pad).astype(jnp.bfloat16),  # [128, 128]
        "b4": pad2(params["b4"], 1, act_pad).astype(jnp.float32),        # [1, 128]
        "action_size": action_size,
    }


def qnet_forward(x, prepared, *, tb=512):
    """x: [B, state_size] float32; prepared: output of prepare_qnet_params."""
    B, S = x.shape
    action_size = prepared["action_size"]

    # Adaptive batch tile: never inflate a tiny batch to a full 512-row tile,
    # but keep the sublane (8) divisibility requirement on the block shape.
    tb = max(8, min(tb, _round_up(B, 8)))
    b_pad = _round_up(B, tb)
    xp = x if b_pad == B else jnp.pad(x, ((0, b_pad - B), (0, 0)))

    const = lambda i: (0, 0)  # weights/biases: single block, resident across grid steps

    kernel = functools.partial(qnet_kernel, action_size=action_size)

    out = pl.pallas_call(
        kernel,
        out_shape=jax.ShapeDtypeStruct((b_pad, action_size), jnp.float32),
        grid=(b_pad // tb,),
        in_specs=[
            pl.BlockSpec((tb, S), lambda i: (i, 0)),
            pl.BlockSpec(prepared["w1"].shape, const),
            pl.BlockSpec(prepared["b1"].shape, const),
            pl.BlockSpec(prepared["w2"].shape, const),
            pl.BlockSpec(prepared["b2"].shape, const),
            pl.BlockSpec(prepared["w3"].shape, const),
            pl.BlockSpec(prepared["b3"].shape, const),
            pl.BlockSpec(prepared["w4"].shape, const),
            pl.BlockSpec(prepared["b4"].shape, const),
        ],
        out_specs=pl.BlockSpec((tb, action_size), lambda i: (i, 0)),
        compiler_params=pltpu.CompilerParams(
            dimension_semantics=("parallel",)),
    )(xp,
      prepared["w1"], prepared["b1"],
      prepared["w2"], prepared["b2"],
      prepared["w3"], prepared["b3"],
      prepared["w4"], prepared["b4"])

    # Only the (cheap, narrow) batch padding is stripped; no lane slicing left.
    return out if b_pad == B else out[:B]


def init_qnet_params(state_size, action_size, key):
    """Deterministic synthetic init (nn.Linear shapes, transposed to [in, out])."""
    dims = [state_size, 256, 128, 64, action_size]
    params = {}
    keys = jax.random.split(key, 4)
    for i in range(4):
        fan_in, fan_out = dims[i], dims[i + 1]
        bound = 1.0 / jnp.sqrt(jnp.float32(fan_in))
        wk, bk = jax.random.split(keys[i])
        params[f"w{i+1}"] = jax.random.uniform(
            wk, (fan_in, fan_out), jnp.float32, minval=-bound, maxval=bound)
        params[f"b{i+1}"] = jax.random.uniform(
            bk, (1, fan_out), jnp.float32, minval=-bound, maxval=bound)
    return params


def qnet_reference(x, params):
    h = jnp.maximum(x @ params["w1"] + params["b1"], 0.0)
    h = jnp.maximum(h @ params["w2"] + params["b2"], 0.0)
    h = jnp.maximum(h @ params["w3"] + params["b3"], 0.0)
    return h @ params["w4"] + params["b4"]


# TODO(synk): Qnet.sample_action (epsilon-greedy with host-side numpy RNG /
# argmax) is host control flow, not a kernel; only forward() is implemented.

if __name__ == "__main__":
    state_size = 8
    action_size = 4
    batch = 2

    key = jax.random.PRNGKey(0)
    pkey, xkey = jax.random.split(key)

    params = init_qnet_params(state_size, action_size, pkey)
    prepared = prepare_qnet_params(params)
    x = jax.random.normal(xkey, (batch, state_size), jnp.float32)

    out = qnet_forward(x, prepared)
    out = jax.block_until_ready(out)

    ref = qnet_reference(x, params)
    assert out.shape == (batch, action_size), out.shape
    # bf16 matmul operands with f32 accumulation -> loosen tolerance vs. f32 ref.
    assert jnp.allclose(out, ref, atol=3e-2, rtol=3e-2), (out, ref)

    # Also exercise a batch large enough to use multiple (parallel) grid steps.
    xb = jax.random.normal(xkey, (1030, state_size), jnp.float32)
    outb = jax.block_until_ready(qnet_forward(xb, prepared))
    refb = qnet_reference(xb, params)
    assert outb.shape == (1030, action_size), outb.shape
    assert jnp.allclose(outb, refb, atol=3e-2, rtol=3e-2)

    print("KERNEL_OK")
</pallas_src>

<mosaic_0001>
module attributes {stable_mosaic.version = 11 : i64} {
  func.func @qnet_kernel(%arg0: i32, %arg1: memref<8x8xf32, #tpu.memory_space<vmem>>, %arg2: memref<8x256xbf16, #tpu.memory_space<vmem>>, %arg3: memref<1x256xf32, #tpu.memory_space<vmem>>, %arg4: memref<256x128xbf16, #tpu.memory_space<vmem>>, %arg5: memref<1x128xf32, #tpu.memory_space<vmem>>, %arg6: memref<128x128xbf16, #tpu.memory_space<vmem>>, %arg7: memref<1x128xf32, #tpu.memory_space<vmem>>, %arg8: memref<128x128xbf16, #tpu.memory_space<vmem>>, %arg9: memref<1x128xf32, #tpu.memory_space<vmem>>, %arg10: memref<8x4xf32, #tpu.memory_space<vmem>>) attributes {dimension_semantics = [#tpu.dimension_semantics<parallel>], iteration_bounds = array<i64: 1>, scalar_prefetch = 0 : i64, scratch_operands = 0 : i64, tpu.core_type = #tpu.core_type<tc>, window_params = [{transform_indices = @transform_0, window_bounds = array<i64: 8, 8>}, {pipeline_mode = #tpu.pipeline_mode<synchronous>, transform_indices = @transform_1, window_bounds = array<i64: 8, 256>}, {pipeline_mode = #tpu.pipeline_mode<synchronous>, transform_indices = @transform_2, window_bounds = array<i64: 1, 256>}, {pipeline_mode = #tpu.pipeline_mode<synchronous>, transform_indices = @transform_3, window_bounds = array<i64: 256, 128>}, {pipeline_mode = #tpu.pipeline_mode<synchronous>, transform_indices = @transform_4, window_bounds = array<i64: 1, 128>}, {pipeline_mode = #tpu.pipeline_mode<synchronous>, transform_indices = @transform_5, window_bounds = array<i64: 128, 128>}, {pipeline_mode = #tpu.pipeline_mode<synchronous>, transform_indices = @transform_6, window_bounds = array<i64: 1, 128>}, {pipeline_mode = #tpu.pipeline_mode<synchronous>, transform_indices = @transform_7, window_bounds = array<i64: 128, 128>}, {pipeline_mode = #tpu.pipeline_mode<synchronous>, transform_indices = @transform_8, window_bounds = array<i64: 1, 128>}, {transform_indices = @transform_9, window_bounds = array<i64: 8, 4>}]} {
    %c0 = arith.constant 0 : index
    %c0_0 = arith.constant 0 : index
    %0 = vector.load %arg1[%c0, %c0_0] : memref<8x8xf32, #tpu.memory_space<vmem>>, vector<8x8xf32>
    %1 = arith.truncf %0 : vector<8x8xf32> to vector<8x8xbf16>
    %c0_1 = arith.constant 0 : index
    %c0_2 = arith.constant 0 : index
    %2 = vector.load %arg2[%c0_1, %c0_2] : memref<8x256xbf16, #tpu.memory_space<vmem>>, vector<8x256xbf16>
    %cst = arith.constant dense<0.000000e+00> : vector<8x256xf32>
    %3 = tpu.matmul %1, %2, %cst {dimension_numbers = #tpu.dot_dimension_numbers<[1], [0], [0], [1], [0, 0, 1, 1], [], []>} : vector<8x8xbf16>, vector<8x256xbf16>, vector<8x256xf32> -> vector<8x256xf32>
    %c0_3 = arith.constant 0 : index
    %c0_4 = arith.constant 0 : index
    %4 = vector.load %arg3[%c0_3, %c0_4] : memref<1x256xf32, #tpu.memory_space<vmem>>, vector<1x256xf32>
    %5 = vector.broadcast %4 : vector<1x256xf32> to vector<8x256xf32>
    %6 = arith.addf %3, %5 : vector<8x256xf32>
    %cst_5 = arith.constant 0.000000e+00 : f32
    %7 = vector.broadcast %cst_5 : f32 to vector<8x256xf32>
    %8 = arith.maximumf %6, %7 : vector<8x256xf32>
    %9 = arith.truncf %8 : vector<8x256xf32> to vector<8x256xbf16>
    %c0_6 = arith.constant 0 : index
    %c0_7 = arith.constant 0 : index
    %10 = vector.load %arg4[%c0_6, %c0_7] : memref<256x128xbf16, #tpu.memory_space<vmem>>, vector<256x128xbf16>
    %cst_8 = arith.constant dense<0.000000e+00> : vector<8x128xf32>
    %11 = tpu.matmul %9, %10, %cst_8 {dimension_numbers = #tpu.dot_dimension_numbers<[1], [0], [0], [1], [0, 0, 1, 1], [], []>} : vector<8x256xbf16>, vector<256x128xbf16>, vector<8x128xf32> -> vector<8x128xf32>
    %c0_9 = arith.constant 0 : index
    %c0_10 = arith.constant 0 : index
    %12 = vector.load %arg5[%c0_9, %c0_10] : memref<1x128xf32, #tpu.memory_space<vmem>>, vector<1x128xf32>
    %13 = vector.broadcast %12 : vector<1x128xf32> to vector<8x128xf32>
    %14 = arith.addf %11, %13 : vector<8x128xf32>
    %cst_11 = arith.constant 0.000000e+00 : f32
    %15 = vector.broadcast %cst_11 : f32 to vector<8x128xf32>
    %16 = arith.maximumf %14, %15 : vector<8x128xf32>
    %17 = arith.truncf %16 : vector<8x128xf32> to vector<8x128xbf16>
    %c0_12 = arith.constant 0 : index
    %c0_13 = arith.constant 0 : index
    %18 = vector.load %arg6[%c0_12, %c0_13] : memref<128x128xbf16, #tpu.memory_space<vmem>>, vector<128x128xbf16>
    %cst_14 = arith.constant dense<0.000000e+00> : vector<8x128xf32>
    %19 = tpu.matmul %17, %18, %cst_14 {dimension_numbers = #tpu.dot_dimension_numbers<[1], [0], [0], [1], [0, 0, 1, 1], [], []>} : vector<8x128xbf16>, vector<128x128xbf16>, vector<8x128xf32> -> vector<8x128xf32>
    %c0_15 = arith.constant 0 : index
    %c0_16 = arith.constant 0 : index
    %20 = vector.load %arg7[%c0_15, %c0_16] : memref<1x128xf32, #tpu.memory_space<vmem>>, vector<1x128xf32>
    %21 = vector.broadcast %20 : vector<1x128xf32> to vector<8x128xf32>
    %22 = arith.addf %19, %21 : vector<8x128xf32>
    %cst_17 = arith.constant 0.000000e+00 : f32
    %23 = vector.broadcast %cst_17 : f32 to vector<8x128xf32>
    %24 = arith.maximumf %22, %23 : vector<8x128xf32>
    %25 = arith.truncf %24 : vector<8x128xf32> to vector<8x128xbf16>
    %c0_18 = arith.constant 0 : index
    %c0_19 = arith.constant 0 : index
    %26 = vector.load %arg8[%c0_18, %c0_19] : memref<128x128xbf16, #tpu.memory_space<vmem>>, vector<128x128xbf16>
    %cst_20 = arith.constant dense<0.000000e+00> : vector<8x128xf32>
    %27 = tpu.matmul %25, %26, %cst_20 {dimension_numbers = #tpu.dot_dimension_numbers<[1], [0], [0], [1], [0, 0, 1, 1], [], []>} : vector<8x128xbf16>, vector<128x128xbf16>, vector<8x128xf32> -> vector<8x128xf32>
    %c0_21 = arith.constant 0 : index
    %c0_22 = arith.constant 0 : index
    %28 = vector.load %arg9[%c0_21, %c0_22] : memref<1x128xf32, #tpu.memory_space<vmem>>, vector<1x128xf32>
    %29 = vector.broadcast %28 : vector<1x128xf32> to vector<8x128xf32>
    %30 = arith.addf %27, %29 : vector<8x128xf32>
    %31 = vector.extract_strided_slice %30 {offsets = [0, 0], sizes = [8, 4], strides = [1, 1]} : vector<8x128xf32> to vector<8x4xf32>
    %c0_23 = arith.constant 0 : index
    %c0_24 = arith.constant 0 : index
    %32 = vector.load %arg10[%c0_23, %c0_24] : memref<8x4xf32, #tpu.memory_space<vmem>>, vector<8x4xf32>
    tpu.vector_store %arg10[%c0_23, %c0_24], %31 {strides = array<i32>} : memref<8x4xf32, #tpu.memory_space<vmem>>, vector<8x4xf32>,
    return
  }
  func.func @transform_0(%arg0: i32) -> (i32, i32) {
    %c0_i32 = arith.constant 0 : i32
    %c0_i32_0 = arith.constant 0 : i32
    return %arg0, %c0_i32 : i32, i32
  }
  func.func @transform_1(%arg0: i32) -> (i32, i32) {
    %c0_i32 = arith.constant 0 : i32
    %c0_i32_0 = arith.constant 0 : i32
    %c0_i32_1 = arith.constant 0 : i32
    return %c0_i32, %c0_i32_0 : i32, i32
  }
  func.func @transform_2(%arg0: i32) -> (i32, i32) {
    %c0_i32 = arith.constant 0 : i32
    %c0_i32_0 = arith.constant 0 : i32
    %c0_i32_1 = arith.constant 0 : i32
    return %c0_i32, %c0_i32_0 : i32, i32
  }
  func.func @transform_3(%arg0: i32) -> (i32, i32) {
    %c0_i32 = arith.constant 0 : i32
    %c0_i32_0 = arith.constant 0 : i32
    %c0_i32_1 = arith.constant 0 : i32
    return %c0_i32, %c0_i32_0 : i32, i32
  }
  func.func @transform_4(%arg0: i32) -> (i32, i32) {
    %c0_i32 = arith.constant 0 : i32
    %c0_i32_0 = arith.constant 0 : i32
    %c0_i32_1 = arith.constant 0 : i32
    return %c0_i32, %c0_i32_0 : i32, i32
  }
  func.func @transform_5(%arg0: i32) -> (i32, i32) {
    %c0_i32 = arith.constant 0 : i32
    %c0_i32_0 = arith.constant 0 : i32
    %c0_i32_1 = arith.constant 0 : i32
    return %c0_i32, %c0_i32_0 : i32, i32
  }
  func.func @transform_6(%arg0: i32) -> (i32, i32) {
    %c0_i32 = arith.constant 0 : i32
    %c0_i32_0 = arith.constant 0 : i32
    %c0_i32_1 = arith.constant 0 : i32
    return %c0_i32, %c0_i32_0 : i32, i32
  }
  func.func @transform_7(%arg0: i32) -> (i32, i32) {
    %c0_i32 = arith.constant 0 : i32
    %c0_i32_0 = arith.constant 0 : i32
    %c0_i32_1 = arith.constant 0 : i32
    return %c0_i32, %c0_i32_0 : i32, i32
  }
  func.func @transform_8(%arg0: i32) -> (i32, i32) {
    %c0_i32 = arith.constant 0 : i32
    %c0_i32_0 = arith.constant 0 : i32
    %c0_i32_1 = arith.constant 0 : i32
    return %c0_i32, %c0_i32_0 : i32, i32
  }
  func.func @transform_9(%arg0: i32) -> (i32, i32) {
    %c0_i32 = arith.constant 0 : i32
    %c0_i32_0 = arith.constant 0 : i32
    return %arg0, %c0_i32 : i32, i32
  }
}

</mosaic_0001>

<llo_original>
// kernel: tpu_custom_call.1
$region0: #{tpu_custom_call.1}
  #allocation0 [shape = 'u32[]', space=smem, size = 0x4, offset = 0x4, fixed_abs, tag = 'smem constant byte address 0x4 - core index']
  #allocation1 [shape = 'u32[144,128]{1,0:T(1,128)}', space=vmem, size = 0x12000, scoped, tag = 'internal scratch']
  %s0 = inlined_call_operand.hbm [shape: f32[8,8], index: 0, kind: input, shape index: {}]
  %s1 = inlined_call_operand.hbm [shape: bf16[8,256], index: 1, kind: input, shape index: {}]
  %s2 = inlined_call_operand.vmem [shape: f32[1,256], index: 2, kind: input, shape index: {}]
  %s3 = inlined_call_operand.hbm [shape: bf16[256,128], index: 3, kind: input, shape index: {}]
  %s4 = inlined_call_operand.vmem [shape: f32[1,128], index: 4, kind: input, shape index: {}]
  %s5 = inlined_call_operand.hbm [shape: bf16[128,128], index: 5, kind: input, shape index: {}]
  %s6 = inlined_call_operand.vmem [shape: f32[1,128], index: 6, kind: input, shape index: {}]
  %s7 = inlined_call_operand.hbm [shape: bf16[128,128], index: 7, kind: input, shape index: {}]
  %s8 = inlined_call_operand.vmem [shape: f32[1,128], index: 8, kind: input, shape index: {}]
  %s9 = inlined_call_operand.vmem [shape: f32[8,4], index: 9, kind: output, shape index: {}]
  %s10 = sld [smem:[#allocation0]]
  $region66: #{tpu_custom_call.1} parent=0
    _
  %s12 = ssub.s32 1, %s10
  %s13 = scalar_select 0, %s12, %s10
  $region1: #{tpu_custom_call.1} parent=0
    #allocation2 [shape = 'u8[4096]{0}', space=vmem, size = 0x1000, scoped, tag = 'input window, operand 0, single buffered']
    #allocation3 [shape = 's32[1]{0}', space=sflag, size = 0x4, scoped, tag = 'scoped memory for tpu_custom_call.1']
    #allocation4 [shape = 'u8[4096]{0}', space=vmem, size = 0x1000, scoped, tag = 'input window, operand 1, single buffered']
    #allocation5 [shape = 's32[1]{0}', space=sflag, size = 0x4, scoped, tag = 'scoped memory for tpu_custom_call.1']
    #allocation6 [shape = 'u8[65536]{0}', space=vmem, size = 0x10000, scoped, tag = 'input window, operand 3, single buffered']
    #allocation7 [shape = 'u8[32768]{0}', space=vmem, size = 0x8000, scoped, tag = 'input window, operand 5, single buffered']
    #allocation8 [shape = 's32[1]{0}', space=sflag, size = 0x4, scoped, tag = 'scoped memory for tpu_custom_call.1']
    #allocation9 [shape = 'u8[32768]{0}', space=vmem, size = 0x8000, scoped, tag = 'input window, operand 7, single buffered']
    %14 = vsyncpa [#allocation3], 0
    %15 = vsyncpa [#allocation5], 0
    %16 = vsyncpa [#allocation8], 0
    // Predicated region
    $region2: #{tpu_custom_call.1} parent=1 // pred_check
      _
    $region3: #{tpu_custom_call.1} parent=1 // pred_check_branch
      %18 = sbr.rel (0) target = $region5
    $region4: #{tpu_custom_call.1} parent=1 // pred_region
      %s20 = ssub.s32 128, 128
      %21 = vsyncadd [#allocation3], %s20
      %s23 = sshll.u32 [#allocation2], 4
      %s24 = int_to_ptr.vmem [resolvable:$true] %s23
      %26 = dma.hbm_to_vmem [thread:$0]  %s0, 128, %s24, [#allocation3]
    $region5: #{tpu_custom_call.1} parent=1 // pred_fallthru
      _
    // Predicated region
    $region6: #{tpu_custom_call.1} parent=1 // pred_check
      _
    $region7: #{tpu_custom_call.1} parent=1 // pred_check_branch
      %28 = sbr.rel (0) target = $region9
    $region8: #{tpu_custom_call.1} parent=1 // pred_region
      %s30 = ssub.s32 128, 128
      %31 = vsyncadd [#allocation5], %s30
      %s33 = sshll.u32 [#allocation4], 4
      %s34 = int_to_ptr.vmem [resolvable:$true] %s33
      %36 = dma.hbm_to_vmem [thread:$0]  %s1, 128, %s34, [#allocation5]
    $region9: #{tpu_custom_call.1} parent=1 // pred_fallthru
      _
    // Predicated region
    $region10: #{tpu_custom_call.1} parent=1 // pred_check
      _
    $region11: #{tpu_custom_call.1} parent=1 // pred_check_branch
      %38 = sbr.rel (0) target = $region13
    $region12: #{tpu_custom_call.1} parent=1 // pred_region
      _
    $region13: #{tpu_custom_call.1} parent=1 // pred_fallthru
      _
    // Predicated region
    $region14: #{tpu_custom_call.1} parent=1 // pred_check
      _
    $region15: #{tpu_custom_call.1} parent=1 // pred_check_branch
      %40 = sbr.rel (0) target = $region17
    $region16: #{tpu_custom_call.1} parent=1 // pred_region
      %s42 = ssub.s32 2048, 2048
      %43 = vsyncadd [#allocation5], %s42
      %s44 = sshll.u32 [#allocation6], 4
      %s45 = int_to_ptr.vmem [resolvable:$true] %s44
      %50 = dma.hbm_to_vmem [thread:$0]  %s3, 2048, %s45, [#allocation5], 64, 64, 4
    $region17: #{tpu_custom_call.1} parent=1 // pred_fallthru
      _
    // Predicated region
    $region18: #{tpu_custom_call.1} parent=1 // pred_check
      _
    $region19: #{tpu_custom_call.1} parent=1 // pred_check_branch
      %52 = sbr.rel (0) target = $region21
    $region20: #{tpu_custom_call.1} parent=1 // pred_region
      _
    $region21: #{tpu_custom_call.1} parent=1 // pred_fallthru
      _
    // Predicated region
    $region22: #{tpu_custom_call.1} parent=1 // pred_check
      _
    $region23: #{tpu_custom_call.1} parent=1 // pred_check_branch
      %54 = sbr.rel (0) target = $region25
    $region24: #{tpu_custom_call.1} parent=1 // pred_region
      %s56 = ssub.s32 1024, 1024
      %57 = vsyncadd [#allocation8], %s56
      %s58 = sshll.u32 [#allocation7], 4
      %s59 = int_to_ptr.vmem [resolvable:$true] %s58
      %64 = dma.hbm_to_vmem [thread:$0]  %s5, 1024, %s59, [#allocation8], 64, 64, 4
    $region25: #{tpu_custom_call.1} parent=1 // pred_fallthru
      _
    // Predicated region
    $region26: #{tpu_custom_call.1} parent=1 // pred_check
      _
    $region27: #{tpu_custom_call.1} parent=1 // pred_check_branch
      %66 = sbr.rel (0) target = $region29
    $region28: #{tpu_custom_call.1} parent=1 // pred_region
      _
    $region29: #{tpu_custom_call.1} parent=1 // pred_fallthru
      _
    // Predicated region
    $region30: #{tpu_custom_call.1} parent=1 // pred_check
      _
    $region31: #{tpu_custom_call.1} parent=1 // pred_check_branch
      %68 = sbr.rel (0) target = $region33
    $region32: #{tpu_custom_call.1} parent=1 // pred_region
      %s70 = ssub.s32 1024, 1024
      %71 = vsyncadd [#allocation8], %s70
      %s72 = sshll.u32 [#allocation9], 4
      %s73 = int_to_ptr.vmem [resolvable:$true] %s72
      %78 = dma.hbm_to_vmem [thread:$0]  %s7, 1024, %s73, [#allocation8], 64, 64, 4
    $region33: #{tpu_custom_call.1} parent=1 // pred_fallthru
      _
    // Predicated region
    $region34: #{tpu_custom_call.1} parent=1 // pred_check
      _
    $region35: #{tpu_custom_call.1} parent=1 // pred_check_branch
      %80 = sbr.rel (0) target = $region37
    $region36: #{tpu_custom_call.1} parent=1 // pred_region
      _
    $region37: #{tpu_custom_call.1} parent=1 // pred_fallthru
      _
    // Predicated region
    $region38: #{tpu_custom_call.1} parent=1 // pred_check
      _
    $region39: #{tpu_custom_call.1} parent=1 // pred_check_branch
      %82 = sbr.rel (0) target = $region41
    $region40: #{tpu_custom_call.1} parent=1 // pred_region
      %83 = dma.done [#allocation3], 128
    $region41: #{tpu_custom_call.1} parent=1 // pred_fallthru
      _
    // Predicated region
    $region42: #{tpu_custom_call.1} parent=1 // pred_check
      _
    $region43: #{tpu_custom_call.1} parent=1 // pred_check_branch
      %85 = sbr.rel (0) target = $region45
    $region44: #{tpu_custom_call.1} parent=1 // pred_region
      %86 = dma.done [#allocation5], 128
    $region45: #{tpu_custom_call.1} parent=1 // pred_fallthru
      _
    // Predicated region
    $region46: #{tpu_custom_call.1} parent=1 // pred_check
      _
    $region47: #{tpu_custom_call.1} parent=1 // pred_check_branch
      %88 = sbr.rel (0) target = $region49
    $region48: #{tpu_custom_call.1} parent=1 // pred_region
      %89 = dma.done [#allocation5], 2048
    $region49: #{tpu_custom_call.1} parent=1 // pred_fallthru
      _
    // Predicated region
    $region50: #{tpu_custom_call.1} parent=1 // pred_check
      _
    $region51: #{tpu_custom_call.1} parent=1 // pred_check_branch
      %91 = sbr.rel (0) target = $region53
    $region52: #{tpu_custom_call.1} parent=1 // pred_region
      %92 = dma.done [#allocation8], 1024
    $region53: #{tpu_custom_call.1} parent=1 // pred_fallthru
      _
    // Predicated region
    $region54: #{tpu_custom_call.1} parent=1 // pred_check
      _
    $region55: #{tpu_custom_call.1} parent=1 // pred_check_branch
      %94 = sbr.rel (0) target = $region57
    $region56: #{tpu_custom_call.1} parent=1 // pred_region
      %95 = dma.done [#allocation8], 1024
    $region57: #{tpu_custom_call.1} parent=1 // pred_fallthru
      _
    %v97 = vld [vmem:[#allocation2] sm:$0xff]
    %v98 = vpack.c.bf16 %v97, %v97
    %v99 = vld [vmem:[#allocation4] sm:$0xff]
    %v100 = vld [vmem:[%s2] sm:$0x3]
    %v102 = vlaneseq
    %v103 = vshrl.u32 %v102, 7
    %v104 = vsub.s32 0, %v103
    %v105 = vrot.slane %v100, %v104
    %v106 = vlaneseq
    %v107 = vshrl.u32 %v106, 7
    %v108 = vsub.s32 1, %v107
    %v109 = vrot.slane %v100, %v108
    %v113 = vunpack.c.l.b16 %v99
    %v114 = vunpack.c.h.b16 %v99
    %v115 = vpack.c.b16 %v113, %v113
    %v116 = vpack.c.b16 %v114, %v114
    %vm117 = vcmask 64512
    %v119 = vsel %vm117, %v98, 0
    %vm121 = vcmask 1043456
    %v123 = vsel %vm121, %v115, 0
    %v126 = vsel %vm121, %v116, 0
    %128 = vmatprep.subr.bf16.mxu0 %v126
    %129 = vmatpush1.bf16.msra.mxu0 %v123
    %130 = vmatprep.subr.bf16.mxu0 0
    %131 = vmatpush1.bf16.msra.mxu0 0
    %132 = vmatprep.subr.bf16.mxu0 0
    %133 = vmatpush1.bf16.msra.mxu0 0
    %134 = vmatprep.subr.bf16.mxu0 0
    %135 = vmatpush1.bf16.msra.mxu0 0
    %136 = vmatprep.subr.bf16.mxu0 0
    %137 = vmatpush1.bf16.msra.mxu0 0
    %138 = vmatprep.subr.bf16.mxu0 0
    %139 = vmatpush1.bf16.msra.mxu0 0
    %140 = vmatprep.subr.bf16.mxu0 0
    %141 = vmatpush1.bf16.msra.mxu0 0
    %142 = vmatprep.subr.bf16.mxu0 0
    %143 = vmatpush1.bf16.msra.mxu0 0
    %144 = vmatprep.subr.bf16.mxu0 0
    %145 = vmatpush1.bf16.msra.mxu0 0
    %146 = vmatprep.subr.bf16.mxu0 0
    %147 = vmatpush1.bf16.msra.mxu0 0
    %148 = vmatprep.subr.bf16.mxu0 0
    %149 = vmatpush1.bf16.msra.mxu0 0
    %150 = vmatprep.subr.bf16.mxu0 0
    %151 = vmatpush1.bf16.msra.mxu0 0
    %152 = vmatprep.subr.bf16.mxu0 0
    %153 = vmatpush1.bf16.msra.mxu0 0
    %154 = vmatprep.subr.bf16.mxu0 0
    %155 = vmatpush1.bf16.msra.mxu0 0
    %156 = vmatprep.subr.bf16.mxu0 0
    %157 = vmatpush1.bf16.msra.mxu0 0
    %158 = vmatprep.subr.bf16.mxu0 0
    %159 = vmatpush1.bf16.msra.mxu0 0
    %160 = vmatprep.mubr.bf16.mxu0 0
    %161 = vmatmul.mubr.bf16.gmra.mrb[0].mxu0 %v119
    %v162 = vpop.f32.mrb[0].mxu0
    %v163 = vadd.f32 %v105, %v162
    %v164 = vpop.f32.mrb[0].mxu0
    %v165 = vadd.f32 %v109, %v164
    %v166 = vpop.f32.mrb[0].mxu0
    %v167 = vpop.f32.mrb[0].mxu0
    %168 = vdwg.mxu0
    %v169 = vmax.f32 %v163, 0.0
    %v170 = vmax.f32 %v165, 0.0
    %v171 = vpack.c.bf16 %v169, %v169
    %v172 = vpack.c.bf16 %v170, %v170
    %v173 = vld [vmem:[#allocation6] sm:$0xf]
    %v174 = vld [vmem:[#allocation6 + $0x4] sm:$0xf]
    %v175 = vld [vmem:[#allocation6 + $0x8] sm:$0xf]
    %v176 = vld [vmem:[#allocation6 + $0xc] sm:$0xf]
    %v177 = vld [vmem:[#allocation6 + $0x10] sm:$0xf]
    %v178 = vld [vmem:[#allocation6 + $0x14] sm:$0xf]
    %v179 = vld [vmem:[#allocation6 + $0x18] sm:$0xf]
    %v180 = vld [vmem:[#allocation6 + $0x1c] sm:$0xf]
    %v181 = vld [vmem:[#allocation6 + $0x20] sm:$0xf]
    %v182 = vld [vmem:[#allocation6 + $0x24] sm:$0xf]
    %v183 = vld [vmem:[#allocation6 + $0x28] sm:$0xf]
    %v184 = vld [vmem:[#allocation6 + $0x2c] sm:$0xf]
    %v185 = vld [vmem:[#allocation6 + $0x30] sm:$0xf]
    %v186 = vld [vmem:[#allocation6 + $0x34] sm:$0xf]
    %v187 = vld [vmem:[#allocation6 + $0x38] sm:$0xf]
    %v188 = vld [vmem:[#allocation6 + $0x3c] sm:$0xf]
    %v189 = vld [vmem:[#allocation6 + $0x40] sm:$0xf]
    %v190 = vld [vmem:[#allocation6 + $0x44] sm:$0xf]
    %v191 = vld [vmem:[#allocation6 + $0x48] sm:$0xf]
    %v192 = vld [vmem:[#allocation6 + $0x4c] sm:$0xf]
    %v193 = vld [vmem:[#allocation6 + $0x50] sm:$0xf]
    %v194 = vld [vmem:[#allocation6 + $0x54] sm:$0xf]
    %v195 = vld [vmem:[#allocation6 + $0x58] sm:$0xf]
    %v196 = vld [vmem:[#allocation6 + $0x5c] sm:$0xf]
    %v197 = vld [vmem:[#allocation6 + $0x60] sm:$0xf]
    %v198 = vld [vmem:[#allocation6 + $0x64] sm:$0xf]
    %v199 = vld [vmem:[#allocation6 + $0x68] sm:$0xf]
    %v200 = vld [vmem:[#allocation6 + $0x6c] sm:$0xf]
    %v201 = vld [vmem:[#allocation6 + $0x70] sm:$0xf]
    %v202 = vld [vmem:[#allocation6 + $0x74] sm:$0xf]
    %v203 = vld [vmem:[#allocation6 + $0x78] sm:$0xf]
    %v204 = vld [vmem:[#allocation6 + $0x7c] sm:$0xf]
    %v205 = vld [vmem:[%s4] sm:$0x1]
    %v207 = vlaneseq
    %v208 = vshrl.u32 %v207, 7
    %v209 = vsub.s32 0, %v208
    %v210 = vrot.slane %v205, %v209
    %v244 = vunpack.c.l.b16 %v173
    %v245 = vunpack.c.l.b16 %v174
    %v246 = vunpack.c.l.b16 %v175
    %v247 = vunpack.c.l.b16 %v176
    %v248 = vunpack.c.l.b16 %v177
    %v249 = vunpack.c.l.b16 %v178
    %v250 = vunpack.c.l.b16 %v179
    %v251 = vunpack.c.l.b16 %v180
    %v252 = vunpack.c.l.b16 %v181
    %v253 = vunpack.c.l.b16 %v182
    %v254 = vunpack.c.l.b16 %v183
    %v255 = vunpack.c.l.b16 %v184
    %v256 = vunpack.c.l.b16 %v185
    %v257 = vunpack.c.l.b16 %v186
    %v258 = vunpack.c.l.b16 %v187
    %v259 = vunpack.c.l.b16 %v188
    %v260 = vunpack.c.l.b16 %v189
    %v261 = vunpack.c.l.b16 %v190
    %v262 = vunpack.c.l.b16 %v191
    %v263 = vunpack.c.l.b16 %v192
    %v264 = vunpack.c.l.b16 %v193
    %v265 = vunpack.c.l.b16 %v194
    %v266 = vunpack.c.l.b16 %v195
    %v267 = vunpack.c.l.b16 %v196
    %v268 = vunpack.c.l.b16 %v197
    %v269 = vunpack.c.l.b16 %v198
    %v270 = vunpack.c.l.b16 %v199
    %v271 = vunpack.c.l.b16 %v200
    %v272 = vunpack.c.l.b16 %v201
    %v273 = vunpack.c.l.b16 %v202
    %v274 = vunpack.c.l.b16 %v203
    %v275 = vunpack.c.l.b16 %v204
    %v276 = vpack.c.b16 %v245, %v244
    %v277 = vpack.c.b16 %v247, %v246
    %v278 = vpack.c.b16 %v249, %v248
    %v279 = vpack.c.b16 %v251, %v250
    %v280 = vpack.c.b16 %v253, %v252
    %v281 = vpack.c.b16 %v255, %v254
    %v282 = vpack.c.b16 %v257, %v256
    %v283 = vpack.c.b16 %v259, %v258
    %v284 = vpack.c.b16 %v261, %v260
    %v285 = vpack.c.b16 %v263, %v262
    %v286 = vpack.c.b16 %v265, %v264
    %v287 = vpack.c.b16 %v267, %v266
    %v288 = vpack.c.b16 %v269, %v268
    %v289 = vpack.c.b16 %v271, %v270
    %v290 = vpack.c.b16 %v273, %v272
    %v291 = vpack.c.b16 %v275, %v274
    %308 = vmatprep.subr.bf16.mxu0 0
    %309 = vmatpush1.bf16.msra.mxu0 %v276
    %310 = vmatprep.subr.bf16.mxu0 0
    %311 = vmatpush1.bf16.msra.mxu0 %v277
    %312 = vmatprep.subr.bf16.mxu0 0
    %313 = vmatpush1.bf16.msra.mxu0 %v278
    %314 = vmatprep.subr.bf16.mxu0 0
    %315 = vmatpush1.bf16.msra.mxu0 %v279
    %316 = vmatprep.subr.bf16.mxu0 0
    %317 = vmatpush1.bf16.msra.mxu0 %v280
    %318 = vmatprep.subr.bf16.mxu0 0
    %319 = vmatpush1.bf16.msra.mxu0 %v281
    %320 = vmatprep.subr.bf16.mxu0 0
    %321 = vmatpush1.bf16.msra.mxu0 %v282
    %322 = vmatprep.subr.bf16.mxu0 0
    %323 = vmatpush1.bf16.msra.mxu0 %v283
    %324 = vmatprep.subr.bf16.mxu0 0
    %325 = vmatpush1.bf16.msra.mxu0 %v284
    %326 = vmatprep.subr.bf16.mxu0 0
    %327 = vmatpush1.bf16.msra.mxu0 %v285
    %328 = vmatprep.subr.bf16.mxu0 0
    %329 = vmatpush1.bf16.msra.mxu0 %v286
    %330 = vmatprep.subr.bf16.mxu0 0
    %331 = vmatpush1.bf16.msra.mxu0 %v287
    %332 = vmatprep.subr.bf16.mxu0 0
    %333 = vmatpush1.bf16.msra.mxu0 %v288
    %334 = vmatprep.subr.bf16.mxu0 0
    %335 = vmatpush1.bf16.msra.mxu0 %v289
    %336 = vmatprep.subr.bf16.mxu0 0
    %337 = vmatpush1.bf16.msra.mxu0 %v290
    %338 = vmatprep.subr.bf16.mxu0 0
    %339 = vmatpush1.bf16.msra.mxu0 %v291
    %340 = vmatprep.mubr.bf16.mxu0 %v172
    %341 = vmatmul.mubr.bf16.gmra.mrb[0].mxu0 %v171
    %v342 = vpop.f32.mrb[0].mxu0
    %v343 = vadd.f32 %v210, %v342
    %v344 = vpop.f32.mrb[0].mxu0
    %v345 = vpop.f32.mrb[0].mxu0
    %v346 = vpop.f32.mrb[0].mxu0
    %347 = vdwg.mxu0
    %v348 = vmax.f32 %v343, 0.0
    %v349 = vpack.c.bf16 %v348, %v348
    %v350 = vld [vmem:[#allocation7] sm:$0xf]
    %v351 = vld [vmem:[#allocation7 + $0x4] sm:$0xf]
    %v352 = vld [vmem:[#allocation7 + $0x8] sm:$0xf]
    %v353 = vld [vmem:[#allocation7 + $0xc] sm:$0xf]
    %v354 = vld [vmem:[#allocation7 + $0x10] sm:$0xf]
    %v355 = vld [vmem:[#allocation7 + $0x14] sm:$0xf]
    %v356 = vld [vmem:[#allocation7 + $0x18] sm:$0xf]
    %v357 = vld [vmem:[#allocation7 + $0x1c] sm:$0xf]
    %v358 = vld [vmem:[#allocation7 + $0x20] sm:$0xf]
    %v359 = vld [vmem:[#allocation7 + $0x24] sm:$0xf]
    %v360 = vld [vmem:[#allocation7 + $0x28] sm:$0xf]
    %v361 = vld [vmem:[#allocation7 + $0x2c] sm:$0xf]
    %v362 = vld [vmem:[#allocation7 + $0x30] sm:$0xf]
    %v363 = vld [vmem:[#allocation7 + $0x34] sm:$0xf]
    %v364 = vld [vmem:[#allocation7 + $0x38] sm:$0xf]
    %v365 = vld [vmem:[#allocation7 + $0x3c] sm:$0xf]
    %v366 = vld [vmem:[%s6] sm:$0x1]
    %v368 = vlaneseq
    %v369 = vshrl.u32 %v368, 7
    %v370 = vsub.s32 0, %v369
    %v371 = vrot.slane %v366, %v370
    %v389 = vunpack.c.l.b16 %v350
    %v390 = vunpack.c.l.b16 %v351
    %v391 = vunpack.c.l.b16 %v352
    %v392 = vunpack.c.l.b16 %v353
    %v393 = vunpack.c.l.b16 %v354
    %v394 = vunpack.c.l.b16 %v355
    %v395 = vunpack.c.l.b16 %v356
    %v396 = vunpack.c.l.b16 %v357
    %v397 = vunpack.c.l.b16 %v358
    %v398 = vunpack.c.l.b16 %v359
    %v399 = vunpack.c.l.b16 %v360
    %v400 = vunpack.c.l.b16 %v361
    %v401 = vunpack.c.l.b16 %v362
    %v402 = vunpack.c.l.b16 %v363
    %v403 = vunpack.c.l.b16 %v364
    %v404 = vunpack.c.l.b16 %v365
    %v405 = vpack.c.b16 %v390, %v389
    %v406 = vpack.c.b16 %v392, %v391
    %v407 = vpack.c.b16 %v394, %v393
    %v408 = vpack.c.b16 %v396, %v395
    %v409 = vpack.c.b16 %v398, %v397
    %v410 = vpack.c.b16 %v400, %v399
    %v411 = vpack.c.b16 %v402, %v401
    %v412 = vpack.c.b16 %v404, %v403
    %421 = vmatprep.subr.bf16.mxu0 0
    %422 = vmatpush1.bf16.msra.mxu0 %v405
    %423 = vmatprep.subr.bf16.mxu0 0
    %424 = vmatpush1.bf16.msra.mxu0 %v406
    %425 = vmatprep.subr.bf16.mxu0 0
    %426 = vmatpush1.bf16.msra.mxu0 %v407
    %427 = vmatprep.subr.bf16.mxu0 0
    %428 = vmatpush1.bf16.msra.mxu0 %v408
    %429 = vmatprep.subr.bf16.mxu0 0
    %430 = vmatpush1.bf16.msra.mxu0 %v409
    %431 = vmatprep.subr.bf16.mxu0 0
    %432 = vmatpush1.bf16.msra.mxu0 %v410
    %433 = vmatprep.subr.bf16.mxu0 0
    %434 = vmatpush1.bf16.msra.mxu0 %v411
    %435 = vmatprep.subr.bf16.mxu0 0
    %436 = vmatpush1.bf16.msra.mxu0 %v412
    %437 = vmatprep.subr.bf16.mxu0 0
    %438 = vmatpush1.bf16.msra.mxu0 0
    %439 = vmatprep.subr.bf16.mxu0 0
    %440 = vmatpush1.bf16.msra.mxu0 0
    %441 = vmatprep.subr.bf16.mxu0 0
    %442 = vmatpush1.bf16.msra.mxu0 0
    %443 = vmatprep.subr.bf16.mxu0 0
    %444 = vmatpush1.bf16.msra.mxu0 0
    %445 = vmatprep.subr.bf16.mxu0 0
    %446 = vmatpush1.bf16.msra.mxu0 0
    %447 = vmatprep.subr.bf16.mxu0 0
    %448 = vmatpush1.bf16.msra.mxu0 0
    %449 = vmatprep.subr.bf16.mxu0 0
    %450 = vmatpush1.bf16.msra.mxu0 0
    %451 = vmatprep.subr.bf16.mxu0 0
    %452 = vmatpush1.bf16.msra.mxu0 0
    %453 = vmatprep.mubr.bf16.mxu0 0
    %454 = vmatmul.mubr.bf16.gmra.mrb[0].mxu0 %v349
    %v455 = vpop.f32.mrb[0].mxu0
    %v456 = vadd.f32 %v371, %v455
    %v457 = vpop.f32.mrb[0].mxu0
    %v458 = vpop.f32.mrb[0].mxu0
    %v459 = vpop.f32.mrb[0].mxu0
    %460 = vdwg.mxu0
    %v461 = vmax.f32 %v456, 0.0
    %v462 = vpack.c.bf16 %v461, %v461
    %v463 = vld [vmem:[#allocation9] sm:$0xf]
    %v464 = vld [vmem:[#allocation9 + $0x4] sm:$0xf]
    %v465 = vld [vmem:[#allocation9 + $0x8] sm:$0xf]
    %v466 = vld [vmem:[#allocation9 + $0xc] sm:$0xf]
    %v467 = vld [vmem:[#allocation9 + $0x10] sm:$0xf]
    %v468 = vld [vmem:[#allocation9 + $0x14] sm:$0xf]
    %v469 = vld [vmem:[#allocation9 + $0x18] sm:$0xf]
    %v470 = vld [vmem:[#allocation9 + $0x1c] sm:$0xf]
    %v471 = vld [vmem:[#allocation9 + $0x20] sm:$0xf]
    %v472 = vld [vmem:[#allocation9 + $0x24] sm:$0xf]
    %v473 = vld [vmem:[#allocation9 + $0x28] sm:$0xf]
    %v474 = vld [vmem:[#allocation9 + $0x2c] sm:$0xf]
    %v475 = vld [vmem:[#allocation9 + $0x30] sm:$0xf]
    %v476 = vld [vmem:[#allocation9 + $0x34] sm:$0xf]
    %v477 = vld [vmem:[#allocation9 + $0x38] sm:$0xf]
    %v478 = vld [vmem:[#allocation9 + $0x3c] sm:$0xf]
    %v479 = vld [vmem:[%s8] sm:$0x1]
    %v481 = vlaneseq
    %v482 = vshrl.u32 %v481, 7
    %v483 = vsub.s32 0, %v482
    %v484 = vrot.slane %v479, %v483
    %v502 = vunpack.c.l.b16 %v463
    %v503 = vunpack.c.l.b16 %v464
    %v504 = vunpack.c.l.b16 %v465
    %v505 = vunpack.c.l.b16 %v466
    %v506 = vunpack.c.l.b16 %v467
    %v507 = vunpack.c.l.b16 %v468
    %v508 = vunpack.c.l.b16 %v469
    %v509 = vunpack.c.l.b16 %v470
    %v510 = vunpack.c.l.b16 %v471
    %v511 = vunpack.c.l.b16 %v472
    %v512 = vunpack.c.l.b16 %v473
    %v513 = vunpack.c.l.b16 %v474
    %v514 = vunpack.c.l.b16 %v475
    %v515 = vunpack.c.l.b16 %v476
    %v516 = vunpack.c.l.b16 %v477
    %v517 = vunpack.c.l.b16 %v478
    %v518 = vpack.c.b16 %v503, %v502
    %v519 = vpack.c.b16 %v505, %v504
    %v520 = vpack.c.b16 %v507, %v506
    %v521 = vpack.c.b16 %v509, %v508
    %v522 = vpack.c.b16 %v511, %v510
    %v523 = vpack.c.b16 %v513, %v512
    %v524 = vpack.c.b16 %v515, %v514
    %v525 = vpack.c.b16 %v517, %v516
    %534 = vmatprep.subr.bf16.mxu0 0
    %535 = vmatpush1.bf16.msra.mxu0 %v518
    %536 = vmatprep.subr.bf16.mxu0 0
    %537 = vmatpush1.bf16.msra.mxu0 %v519
    %538 = vmatprep.subr.bf16.mxu0 0
    %539 = vmatpush1.bf16.msra.mxu0 %v520
    %540 = vmatprep.subr.bf16.mxu0 0
    %541 = vmatpush1.bf16.msra.mxu0 %v521
    %542 = vmatprep.subr.bf16.mxu0 0
    %543 = vmatpush1.bf16.msra.mxu0 %v522
    %544 = vmatprep.subr.bf16.mxu0 0
    %545 = vmatpush1.bf16.msra.mxu0 %v523
    %546 = vmatprep.subr.bf16.mxu0 0
    %547 = vmatpush1.bf16.msra.mxu0 %v524
    %548 = vmatprep.subr.bf16.mxu0 0
    %549 = vmatpush1.bf16.msra.mxu0 %v525
    %550 = vmatprep.subr.bf16.mxu0 0
    %551 = vmatpush1.bf16.msra.mxu0 0
    %552 = vmatprep.subr.bf16.mxu0 0
    %553 = vmatpush1.bf16.msra.mxu0 0
    %554 = vmatprep.subr.bf16.mxu0 0
    %555 = vmatpush1.bf16.msra.mxu0 0
    %556 = vmatprep.subr.bf16.mxu0 0
    %557 = vmatpush1.bf16.msra.mxu0 0
    %558 = vmatprep.subr.bf16.mxu0 0
    %559 = vmatpush1.bf16.msra.mxu0 0
    %560 = vmatprep.subr.bf16.mxu0 0
    %561 = vmatpush1.bf16.msra.mxu0 0
    %562 = vmatprep.subr.bf16.mxu0 0
    %563 = vmatpush1.bf16.msra.mxu0 0
    %564 = vmatprep.subr.bf16.mxu0 0
    %565 = vmatpush1.bf16.msra.mxu0 0
    %566 = vmatprep.mubr.bf16.mxu0 0
    %567 = vmatmul.mubr.bf16.gmra.mrb[0].mxu0 %v462
    %v568 = vpop.f32.mrb[0].mxu0
    %v569 = vadd.f32 %v484, %v568
    %v570 = vpop.f32.mrb[0].mxu0
    %v571 = vpop.f32.mrb[0].mxu0
    %v572 = vpop.f32.mrb[0].mxu0
    %573 = vdwg.mxu0
    %vm574 = vcmask 31744
    %575 = vst.msk [vmem:[%s9] sm:$0xff] %vm574, %v569
    // Predicated region
    $region58: #{tpu_custom_call.1} parent=1 // pred_check
      _
    $region59: #{tpu_custom_call.1} parent=1 // pred_check_branch
      %577 = sbr.rel (0) target = $region61
    $region60: #{tpu_custom_call.1} parent=1 // pred_region
      _
    $region61: #{tpu_custom_call.1} parent=1 // pred_fallthru
      _
    // Predicated region
    $region62: #{tpu_custom_call.1} parent=1 // pred_check
      _
    $region63: #{tpu_custom_call.1} parent=1 // pred_check_branch
      %579 = sbr.rel (0) target = $region65
    $region64: #{tpu_custom_call.1} parent=1 // pred_region
      _
    $region65: #{tpu_custom_call.1} parent=1 // pred_fallthru
      _
    %580 = vsyncpa [#allocation3], 1
    %581 = vsyncpa [#allocation5], 1
    %582 = vsyncpa [#allocation8], 1

</llo_original>
